<compile_context>
chip_gen: v7x
topology: tpu7x:2x2x1
jax: 0.10.0
libtpu: 0.0.40
codegen_flags: <defaults>
</compile_context>

<pallas_src>
import functools

import jax
import jax.numpy as jnp
import numpy as np
from jax.experimental import pallas as pl
from jax.experimental.pallas import tpu as pltpu

_MIB = 1024 * 1024


def _vmem_capacity_bytes():
    """Physical per-core VMEM; conservative (v7x-safe) fallback if unknown."""
    try:
        return int(pltpu.get_tpu_info().vmem_capacity_bytes)
    except Exception:
        return 64 * _MIB


# ---------------------------------------------------------------------------
# Kernels
# ---------------------------------------------------------------------------

def _fast_kernel(*refs, tile_a, use_labels, loss_scale):
    """Single-pass kernel: the whole [D, N] contrast matrix is VMEM-resident.

    grid = (A // tile_a,). One exact softmax per anchor-row tile; per-anchor
    loss is written directly. No scratch accumulators.
    """
    if use_labels:
        la_ref, ln_ref, cnt_ref, a_ref, bt_ref, out_ref = refs
    else:
        mask_ref, cnt_ref, a_ref, bt_ref, out_ref = refs

    i = pl.program_id(0)

    # [tA, D] @ [D, N]; 1/temperature already folded into the anchor operand.
    adc = jax.lax.dot_general(
        a_ref[...], bt_ref[...],
        dimension_numbers=(((1,), (0,)), ((), ())),
        preferred_element_type=jnp.float32)
    n = adc.shape[1]

    row_g = i * tile_a + jax.lax.broadcasted_iota(jnp.int32, (tile_a, n), 0)
    col_g = jax.lax.broadcasted_iota(jnp.int32, (tile_a, n), 1)
    off_diag = row_g != col_g

    m = jnp.max(adc, axis=1, keepdims=True)                 # == reference logits_max
    p = jnp.where(off_diag, jnp.exp(adc - m), 0.0)
    lse = m + jnp.log(jnp.sum(p, axis=1, keepdims=True))    # log-sum-exp over j != i

    if use_labels:
        pos = jnp.logical_and(la_ref[...] == ln_ref[...], off_diag)
        s = jnp.sum(jnp.where(pos, adc, 0.0), axis=1, keepdims=True)
    else:
        s = jnp.sum(mask_ref[...] * jnp.where(off_diag, adc, 0.0),
                    axis=1, keepdims=True)

    cnt = cnt_ref[...]
    # NOTE: anchors with zero positives yield NaN, same as the PyTorch ref.
    out_ref[...] = (-loss_scale) * (s - cnt * lse) / cnt


def _tiled_kernel(*refs, tile_a, tile_n, use_labels, loss_scale):
    """Online-softmax kernel: grid = (A//tA [parallel], N//tN [arbitrary])."""
    if use_labels:
        la_ref, ln_ref, cnt_ref, a_ref, bt_ref, out_ref, m_sc, d_sc, s_sc = refs
    else:
        mask_ref, cnt_ref, a_ref, bt_ref, out_ref, m_sc, d_sc, s_sc = refs

    i = pl.program_id(0)
    j = pl.program_id(1)

    @pl.when(j == 0)
    def _init():
        m_sc[...] = jnp.full_like(m_sc, -jnp.inf)
        d_sc[...] = jnp.zeros_like(d_sc)
        s_sc[...] = jnp.zeros_like(s_sc)

    adc = jax.lax.dot_general(
        a_ref[...], bt_ref[...],
        dimension_numbers=(((1,), (0,)), ((), ())),
        preferred_element_type=jnp.float32)        # [tA, tN]

    m_prev = m_sc[...]
    m_new = jnp.maximum(m_prev, jnp.max(adc, axis=1, keepdims=True))
    rescale = jnp.exp(m_prev - m_new)

    if use_labels:
        same = la_ref[...] == ln_ref[...]          # bool [tA, tN]
    else:
        maskf = mask_ref[...]                      # f32 [tA, tN]

    row0 = i * tile_a
    col0 = j * tile_n
    # Does this tile intersect the global diagonal row==col?
    touches_diag = jnp.logical_and(row0 < col0 + tile_n, col0 < row0 + tile_a)

    @pl.when(touches_diag)
    def _with_diag():
        row_g = row0 + jax.lax.broadcasted_iota(jnp.int32, (tile_a, tile_n), 0)
        col_g = col0 + jax.lax.broadcasted_iota(jnp.int32, (tile_a, tile_n), 1)
        off_diag = row_g != col_g
        p = jnp.where(off_diag, jnp.exp(adc - m_new), 0.0)
        d_sc[...] = d_sc[...] * rescale + jnp.sum(p, axis=1, keepdims=True)
        if use_labels:
            pos = jnp.logical_and(same, off_diag)
            s_sc[...] += jnp.sum(jnp.where(pos, adc, 0.0), axis=1, keepdims=True)
        else:
            s_sc[...] += jnp.sum(maskf * jnp.where(off_diag, adc, 0.0),
                                 axis=1, keepdims=True)

    @pl.when(jnp.logical_not(touches_diag))
    def _no_diag():
        p = jnp.exp(adc - m_new)
        d_sc[...] = d_sc[...] * rescale + jnp.sum(p, axis=1, keepdims=True)
        if use_labels:
            s_sc[...] += jnp.sum(jnp.where(same, adc, 0.0), axis=1, keepdims=True)
        else:
            s_sc[...] += jnp.sum(maskf * adc, axis=1, keepdims=True)

    m_sc[...] = m_new

    @pl.when(j == pl.num_programs(1) - 1)
    def _finalize():
        cnt = cnt_ref[...]
        lse = m_sc[...] + jnp.log(d_sc[...])
        # NOTE: anchors with zero positives yield NaN, same as the PyTorch ref.
        out_ref[...] = (-loss_scale) * (s_sc[...] - cnt * lse) / cnt


# ---------------------------------------------------------------------------
# Tiling selection
# ---------------------------------------------------------------------------

def _select_tiling(A, N, D, mm_bytes, use_labels, budget, force_tiled):
    """Pick (tile_a, tile_n, fast_path) under a VMEM byte budget."""
    a_cands = [t for t in (512, 256, 128, 64, 32, 16, 8) if t <= A and A % t == 0]
    if not a_cands:
        a_cands = [A]    # non-divisible A: single anchor block (full dim allowed)

    interm_factor = 6    # live [tA, tN] f32 temporaries (adc/exp/selects/iota)

    def fast_bytes(ta):
        feat = 2 * (ta * D + D * N) * mm_bytes
        aux = 2 * N * 4 if use_labels else 2 * ta * N * 4
        return feat + aux + interm_factor * ta * N * 4

    if not force_tiled:
        fast_ok = [t for t in a_cands if fast_bytes(t) <= budget]
        if fast_ok:
            multi = [t for t in fast_ok if A // t >= 2]   # fill both v7x TCs
            return (max(multi) if multi else max(fast_ok)), N, True

    n_cands = [t for t in (2048, 1024, 512, 256, 128) if t <= N and N % t == 0]
    if not n_cands:
        n_cands = [N]

    def tiled_bytes(ta, tn):
        feat = 2 * (ta * D + D * tn) * mm_bytes
        aux = 2 * tn * 4 if use_labels else 2 * ta * tn * 4
        return feat + aux + interm_factor * ta * tn * 4

    best = None
    for ta in a_cands:
        for tn in n_cands:
            if tiled_bytes(ta, tn) <= budget:
                score = (A // ta >= 2, ta * tn)
                if best is None or score > best[0]:
                    best = (score, ta, tn)
    if best is None:
        return min(a_cands), min(n_cands), False
    return best[1], best[2], False


# ---------------------------------------------------------------------------
# Wrapper
# ---------------------------------------------------------------------------

def supcon_loss(features, labels=None, mask=None, *,
                temperature=0.07, contrast_mode='all', base_temperature=0.07,
                matmul_dtype=jnp.float32, force_tiled=False):
    """JAX/Pallas equivalent of SupConLoss.forward.

    `matmul_dtype=jnp.bfloat16` feeds the MXU bf16 operands (halves feature
    DMA, ~2x MXU rate on v6e/v7x); softmax math always stays f32.
    """
    features = jnp.asarray(features, jnp.float32)
    if features.ndim < 3:
        raise ValueError('`features` needs to be [bsz, n_views, ...]')
    if features.ndim > 3:
        features = features.reshape(features.shape[0], features.shape[1], -1)
    bsz, n_views, dim = features.shape
    if labels is not None and mask is not None:
        raise ValueError('Cannot define both `labels` and `mask`')

    contrast_count = n_views
    # cat(unbind(features, dim=1), dim=0): view-major stacking
    contrast_feature = jnp.transpose(features, (1, 0, 2)).reshape(
        n_views * bsz, dim)

    if contrast_mode == 'one':
        anchor_feature = features[:, 0]
        anchor_count = 1
    elif contrast_mode == 'all':
        anchor_feature = contrast_feature
        anchor_count = contrast_count
    else:
        raise ValueError('Unknown mode: {}'.format(contrast_mode))

    A = anchor_count * bsz
    N = contrast_count * bsz
    use_labels = mask is None

    inv_temp = 1.0 / float(temperature)
    loss_scale = float(temperature) / float(base_temperature)

    # Hoisted out of the kernel: 1/T folded into the anchor operand once.
    anchor_in = (anchor_feature * inv_temp).astype(matmul_dtype)
    # Pre-transposed contrast [D, N]: MXU sees (tA, D) x (D, tN), N on lanes.
    contrast_t = contrast_feature.astype(matmul_dtype).T

    # Per-anchor positive counts, hoisted out of the kernel.
    if use_labels:
        if labels is None:
            base_labels = jnp.arange(bsz, dtype=jnp.int32)   # SimCLR: eye mask
        else:
            base_labels = jnp.asarray(labels, jnp.int32).reshape(-1)
            if base_labels.shape[0] != bsz:
                raise ValueError('Num of labels does not match num of features')
        counts = jnp.sum(
            (base_labels[:, None] == base_labels[None, :]).astype(jnp.float32),
            axis=1)
        cnt_base = contrast_count * counts - 1.0
        labels_a = jnp.tile(base_labels, anchor_count).reshape(A, 1)
        labels_n = jnp.tile(base_labels, contrast_count).reshape(1, N)
    else:
        base_mask = jnp.asarray(mask, jnp.float32)
        cnt_base = (contrast_count * jnp.sum(base_mask, axis=1)
                    - jnp.diagonal(base_mask))
    cnt = jnp.tile(cnt_base, anchor_count).reshape(A, 1).astype(jnp.float32)

    # VMEM budgeting (v7x: 64 MiB physical; v5e/v6e: 128 MiB, small scoped default).
    mm_bytes = jnp.dtype(matmul_dtype).itemsize
    cap = _vmem_capacity_bytes()
    vmem_limit = min(int(cap * 0.75), 110 * _MIB)
    budget = int(vmem_limit * 0.8)

    tile_a, tile_n, fast = _select_tiling(A, N, dim, mm_bytes, use_labels,
                                          budget, force_tiled)

    # Explicit-mask path: keep the mask column-tiled [bsz, N] and stream it with
    # a modular row index_map when tile_a divides bsz (no [A, N] mask in HBM).
    if not use_labels:
        mask_colrep = jnp.tile(base_mask, (1, contrast_count))   # [bsz, N]
        if tile_a <= bsz and bsz % tile_a == 0:
            nb = bsz // tile_a
            mask_arr = mask_colrep
            mask_row_idx = (lambda i: 0) if nb == 1 else (lambda i: i % nb)
        else:
            mask_arr = jnp.tile(mask_colrep, (anchor_count, 1))  # [A, N] fallback
            mask_row_idx = lambda i: i

    if fast:
        grid = (A // tile_a,)
        kernel = functools.partial(_fast_kernel, tile_a=tile_a,
                                   use_labels=use_labels, loss_scale=loss_scale)
        if use_labels:
            in_specs = [
                pl.BlockSpec((tile_a, 1), lambda i: (i, 0)),      # labels_a
                pl.BlockSpec((1, N), lambda i: (0, 0)),           # labels_n (resident)
                pl.BlockSpec((tile_a, 1), lambda i: (i, 0)),      # positive counts
                pl.BlockSpec((tile_a, dim), lambda i: (i, 0)),    # anchor tile
                pl.BlockSpec((dim, N), lambda i: (0, 0)),         # contrast^T (resident)
            ]
            inputs = (labels_a, labels_n, cnt, anchor_in, contrast_t)
        else:
            in_specs = [
                pl.BlockSpec((tile_a, N), lambda i: (mask_row_idx(i), 0)),
                pl.BlockSpec((tile_a, 1), lambda i: (i, 0)),
                pl.BlockSpec((tile_a, dim), lambda i: (i, 0)),
                pl.BlockSpec((dim, N), lambda i: (0, 0)),
            ]
            inputs = (mask_arr, cnt, anchor_in, contrast_t)
        out_spec = pl.BlockSpec((tile_a, 1), lambda i: (i, 0))
        dim_sem = ("parallel",)
        scratch = []
    else:
        grid = (A // tile_a, N // tile_n)
        kernel = functools.partial(_tiled_kernel, tile_a=tile_a, tile_n=tile_n,
                                   use_labels=use_labels, loss_scale=loss_scale)
        if use_labels:
            in_specs = [
                pl.BlockSpec((tile_a, 1), lambda i, j: (i, 0)),
                pl.BlockSpec((1, tile_n), lambda i, j: (0, j)),
                pl.BlockSpec((tile_a, 1), lambda i, j: (i, 0)),
                pl.BlockSpec((tile_a, dim), lambda i, j: (i, 0)),
                pl.BlockSpec((dim, tile_n), lambda i, j: (0, j)),
            ]
            inputs = (labels_a, labels_n, cnt, anchor_in, contrast_t)
        else:
            in_specs = [
                pl.BlockSpec((tile_a, tile_n), lambda i, j: (mask_row_idx(i), j)),
                pl.BlockSpec((tile_a, 1), lambda i, j: (i, 0)),
                pl.BlockSpec((tile_a, dim), lambda i, j: (i, 0)),
                pl.BlockSpec((dim, tile_n), lambda i, j: (0, j)),
            ]
            inputs = (mask_arr, cnt, anchor_in, contrast_t)
        out_spec = pl.BlockSpec((tile_a, 1), lambda i, j: (i, 0))
        dim_sem = ("parallel", "arbitrary")
        scratch = [pltpu.VMEM((tile_a, 1), jnp.float32)] * 3   # m, d, s

    per_anchor_loss = pl.pallas_call(
        kernel,
        out_shape=jax.ShapeDtypeStruct((A, 1), jnp.float32),
        grid_spec=pltpu.PrefetchScalarGridSpec(
            num_scalar_prefetch=0,
            grid=grid,
            in_specs=in_specs,
            out_specs=out_spec,
            scratch_shapes=scratch),
        compiler_params=pltpu.CompilerParams(
            dimension_semantics=dim_sem,
            vmem_limit_bytes=vmem_limit),
    )(*inputs)

    # loss.view(anchor_count, batch_size).mean() == mean over all anchors
    return jnp.mean(per_anchor_loss)


# ---------------------------------------------------------------------------
# Pure-JAX reference (mirrors the PyTorch module) and self-test
# ---------------------------------------------------------------------------

def _supcon_loss_ref(features, labels=None, mask=None, *, temperature=0.07,
                     contrast_mode='all', base_temperature=0.07):
    features = jnp.asarray(features, jnp.float32)
    bsz, n_views, dim = features.shape
    if labels is None and mask is None:
        base_mask = jnp.eye(bsz, dtype=jnp.float32)
    elif labels is not None:
        labels = jnp.asarray(labels).reshape(-1, 1)
        base_mask = (labels == labels.T).astype(jnp.float32)
    else:
        base_mask = jnp.asarray(mask, jnp.float32)
    cf = jnp.transpose(features, (1, 0, 2)).reshape(n_views * bsz, dim)
    if contrast_mode == 'one':
        af = features[:, 0]
        anchor_count = 1
    else:
        af = cf
        anchor_count = n_views
    adc = (af @ cf.T) / temperature
    logits = adc - jnp.max(adc, axis=1, keepdims=True)
    m = jnp.tile(base_mask, (anchor_count, n_views))
    A, N = anchor_count * bsz, n_views * bsz
    logits_mask = (jnp.arange(A)[:, None] != jnp.arange(N)[None, :]
                   ).astype(jnp.float32)
    m = m * logits_mask
    exp_logits = jnp.exp(logits) * logits_mask
    log_prob = logits - jnp.log(exp_logits.sum(1, keepdims=True))
    mlpp = (m * log_prob).sum(1) / m.sum(1)
    loss = -(temperature / base_temperature) * mlpp
    return loss.mean()


if __name__ == "__main__":
    key = jax.random.PRNGKey(0)
    k1, k2, k3, k4 = jax.random.split(key, 4)

    # --- small case (fast, full-contrast-resident path) ---
    bsz, n_views, dim = 8, 2, 32
    feats = jax.random.normal(k1, (bsz, n_views, dim), dtype=jnp.float32)
    feats = feats / jnp.linalg.norm(feats, axis=-1, keepdims=True)
    labels = jax.random.randint(k2, (bsz,), 0, 4)
    explicit_mask = (labels[:, None] == labels[None, :]).astype(jnp.float32)

    checks = [
        (supcon_loss(feats), _supcon_loss_ref(feats), 1e-4),
        (supcon_loss(feats, labels=labels),
         _supcon_loss_ref(feats, labels=labels), 1e-4),
        (supcon_loss(feats, labels=labels, contrast_mode='one'),
         _supcon_loss_ref(feats, labels=labels, contrast_mode='one'), 1e-4),
        (supcon_loss(feats, mask=explicit_mask),
         _supcon_loss_ref(feats, mask=explicit_mask), 1e-4),
        # tiled path, explicit mask (modular mask streaming)
        (supcon_loss(feats, mask=explicit_mask, force_tiled=True),
         _supcon_loss_ref(feats, mask=explicit_mask), 1e-4),
    ]

    # --- moderate case exercising both the fast path and the tiled
    #     online-softmax path (A = N = 384 -> 3x3 grid when tiled) ---
    bsz2, n_views2, dim2 = 192, 2, 64
    feats2 = jax.random.normal(k3, (bsz2, n_views2, dim2), dtype=jnp.float32)
    feats2 = feats2 / jnp.linalg.norm(feats2, axis=-1, keepdims=True)
    labels2 = jax.random.randint(k4, (bsz2,), 0, 10)
    mask2 = (labels2[:, None] == labels2[None, :]).astype(jnp.float32)

    checks.append((supcon_loss(feats2, labels=labels2),
                   _supcon_loss_ref(feats2, labels=labels2), 1e-4))
    checks.append((supcon_loss(feats2, labels=labels2, force_tiled=True),
                   _supcon_loss_ref(feats2, labels=labels2), 1e-4))
    checks.append((supcon_loss(feats2, mask=mask2, force_tiled=True),
                   _supcon_loss_ref(feats2, mask=mask2), 1e-4))
    # bf16 MXU path (looser tolerance; softmax math stays f32)
    checks.append((supcon_loss(feats2, labels=labels2,
                               matmul_dtype=jnp.bfloat16),
                   _supcon_loss_ref(feats2, labels=labels2), 5e-2))

    for got, want, tol in checks:
        got = jax.block_until_ready(got)
        assert np.allclose(np.asarray(got), np.asarray(want),
                           rtol=tol, atol=tol), (float(got), float(want), tol)

    print("KERNEL_OK")
</pallas_src>

<mosaic_0001>
module attributes {stable_mosaic.version = 11 : i64} {
  func.func @_fast_kernel(%arg0: i32, %arg1: memref<8x1xi32, #tpu.memory_space<vmem>>, %arg2: memref<1x16xi32, #tpu.memory_space<vmem>>, %arg3: memref<8x1xf32, #tpu.memory_space<vmem>>, %arg4: memref<8x32xf32, #tpu.memory_space<vmem>>, %arg5: memref<32x16xf32, #tpu.memory_space<vmem>>, %arg6: memref<8x1xf32, #tpu.memory_space<vmem>>) attributes {dimension_semantics = [#tpu.dimension_semantics<parallel>], iteration_bounds = array<i64: 2>, scalar_prefetch = 0 : i64, scratch_operands = 0 : i64, tpu.core_type = #tpu.core_type<tc>, window_params = [{transform_indices = @transform_0, window_bounds = array<i64: 8, 1>}, {pipeline_mode = #tpu.pipeline_mode<synchronous>, transform_indices = @transform_1, window_bounds = array<i64: 1, 16>}, {transform_indices = @transform_2, window_bounds = array<i64: 8, 1>}, {transform_indices = @transform_3, window_bounds = array<i64: 8, 32>}, {pipeline_mode = #tpu.pipeline_mode<synchronous>, transform_indices = @transform_4, window_bounds = array<i64: 32, 16>}, {transform_indices = @transform_5, window_bounds = array<i64: 8, 1>}]} {
    %c0 = arith.constant 0 : index
    %c0_0 = arith.constant 0 : index
    %0 = vector.load %arg4[%c0, %c0_0] : memref<8x32xf32, #tpu.memory_space<vmem>>, vector<8x32xf32>
    %c0_1 = arith.constant 0 : index
    %c0_2 = arith.constant 0 : index
    %1 = vector.load %arg5[%c0_1, %c0_2] : memref<32x16xf32, #tpu.memory_space<vmem>>, vector<32x16xf32>
    %cst = arith.constant dense<0.000000e+00> : vector<8x16xf32>
    %2 = tpu.matmul %0, %1, %cst {dimension_numbers = #tpu.dot_dimension_numbers<[1], [0], [0], [1], [0, 0, 1, 1], [], []>} : vector<8x32xf32>, vector<32x16xf32>, vector<8x16xf32> -> vector<8x16xf32>
    %c8_i32 = arith.constant 8 : i32
    %3 = arith.muli %arg0, %c8_i32 : i32
    %4 = tpu.iota {dimensions = array<i32: 0>} : vector<8x16xi32>
    %5 = vector.broadcast %3 : i32 to vector<8x16xi32>
    %6 = arith.addi %5, %4 : vector<8x16xi32>
    %7 = tpu.iota {dimensions = array<i32: 1>} : vector<8x16xi32>
    %8 = arith.cmpi ne, %6, %7 : vector<8x16xi32>
    %cst_3 = arith.constant dense<0xFF800000> : vector<8xf32>
    %9 = vector.multi_reduction <maximumf>, %2, %cst_3 [1] : vector<8x16xf32> to vector<8xf32>
    %10 = vector.shape_cast %9 : vector<8xf32> to vector<8x1xf32>
    %11 = vector.broadcast %10 : vector<8x1xf32> to vector<8x16xf32>
    %12 = arith.subf %2, %11 : vector<8x16xf32>
    %13 = math.exp %12 : vector<8x16xf32>
    %cst_4 = arith.constant 0.000000e+00 : f32
    %14 = vector.broadcast %cst_4 : f32 to vector<8x16xf32>
    %15 = arith.select %8, %13, %14 : vector<8x16xi1>, vector<8x16xf32>
    %cst_5 = arith.constant dense<0.000000e+00> : vector<8xf32>
    %16 = vector.multi_reduction <add>, %15, %cst_5 [1] : vector<8x16xf32> to vector<8xf32>
    %17 = vector.shape_cast %16 : vector<8xf32> to vector<8x1xf32>
    %18 = math.log %17 : vector<8x1xf32>
    %19 = arith.addf %10, %18 : vector<8x1xf32>
    %c0_6 = arith.constant 0 : index
    %c0_7 = arith.constant 0 : index
    %20 = vector.load %arg1[%c0_6, %c0_7] : memref<8x1xi32, #tpu.memory_space<vmem>>, vector<8x1xi32>
    %c0_8 = arith.constant 0 : index
    %c0_9 = arith.constant 0 : index
    %21 = vector.load %arg2[%c0_8, %c0_9] : memref<1x16xi32, #tpu.memory_space<vmem>>, vector<1x16xi32>
    %22 = vector.broadcast %20 : vector<8x1xi32> to vector<8x16xi32>
    %23 = vector.broadcast %21 : vector<1x16xi32> to vector<8x16xi32>
    %24 = arith.cmpi eq, %22, %23 : vector<8x16xi32>
    %25 = arith.andi %24, %8 : vector<8x16xi1>
    %cst_10 = arith.constant 0.000000e+00 : f32
    %26 = vector.broadcast %cst_10 : f32 to vector<8x16xf32>
    %27 = arith.select %25, %2, %26 : vector<8x16xi1>, vector<8x16xf32>
    %cst_11 = arith.constant dense<0.000000e+00> : vector<8xf32>
    %28 = vector.multi_reduction <add>, %27, %cst_11 [1] : vector<8x16xf32> to vector<8xf32>
    %29 = vector.shape_cast %28 : vector<8xf32> to vector<8x1xf32>
    %c0_12 = arith.constant 0 : index
    %c0_13 = arith.constant 0 : index
    %30 = vector.load %arg3[%c0_12, %c0_13] : memref<8x1xf32, #tpu.memory_space<vmem>>, vector<8x1xf32>
    %31 = arith.mulf %30, %19 : vector<8x1xf32>
    %32 = arith.subf %29, %31 : vector<8x1xf32>
    %cst_14 = arith.constant -1.000000e+00 : f32
    %33 = vector.broadcast %cst_14 : f32 to vector<8x1xf32>
    %34 = arith.mulf %33, %32 : vector<8x1xf32>
    %35 = arith.divf %34, %30 : vector<8x1xf32>
    %c0_15 = arith.constant 0 : index
    %c0_16 = arith.constant 0 : index
    %36 = vector.load %arg6[%c0_15, %c0_16] : memref<8x1xf32, #tpu.memory_space<vmem>>, vector<8x1xf32>
    tpu.vector_store %arg6[%c0_15, %c0_16], %35 {strides = array<i32>} : memref<8x1xf32, #tpu.memory_space<vmem>>, vector<8x1xf32>,
    return
  }
  func.func @transform_0(%arg0: i32) -> (i32, i32) {
    %c0_i32 = arith.constant 0 : i32
    %c0_i32_0 = arith.constant 0 : i32
    return %arg0, %c0_i32 : i32, i32
  }
  func.func @transform_1(%arg0: i32) -> (i32, i32) {
    %c0_i32 = arith.constant 0 : i32
    %c0_i32_0 = arith.constant 0 : i32
    %c0_i32_1 = arith.constant 0 : i32
    return %c0_i32, %c0_i32_0 : i32, i32
  }
  func.func @transform_2(%arg0: i32) -> (i32, i32) {
    %c0_i32 = arith.constant 0 : i32
    %c0_i32_0 = arith.constant 0 : i32
    return %arg0, %c0_i32 : i32, i32
  }
  func.func @transform_3(%arg0: i32) -> (i32, i32) {
    %c0_i32 = arith.constant 0 : i32
    %c0_i32_0 = arith.constant 0 : i32
    return %arg0, %c0_i32 : i32, i32
  }
  func.func @transform_4(%arg0: i32) -> (i32, i32) {
    %c0_i32 = arith.constant 0 : i32
    %c0_i32_0 = arith.constant 0 : i32
    %c0_i32_1 = arith.constant 0 : i32
    return %c0_i32, %c0_i32_0 : i32, i32
  }
  func.func @transform_5(%arg0: i32) -> (i32, i32) {
    %c0_i32 = arith.constant 0 : i32
    %c0_i32_0 = arith.constant 0 : i32
    return %arg0, %c0_i32 : i32, i32
  }
}

</mosaic_0001>

<llo_original>
// kernel: tpu_custom_call.1
$region0: #{tpu_custom_call.1}
  #allocation0 [shape = 'u32[]', space=smem, size = 0x4, offset = 0x4, fixed_abs, tag = 'smem constant byte address 0x4 - core index']
  #allocation1 [shape = 'u32[144,128]{1,0:T(1,128)}', space=vmem, size = 0x12000, scoped, tag = 'internal scratch']
  %s0 = inlined_call_operand.vmem [shape: s32[16,1], index: 0, kind: input, shape index: {}]
  %s1 = inlined_call_operand.vmem [shape: s32[1,16], index: 1, kind: input, shape index: {}]
  %s2 = inlined_call_operand.vmem [shape: f32[16,1], index: 2, kind: input, shape index: {}]
  %s3 = inlined_call_operand.vmem [shape: f32[16,32], index: 3, kind: input, shape index: {}]
  %s4 = inlined_call_operand.vmem [shape: f32[32,16], index: 4, kind: input, shape index: {}]
  %s5 = inlined_call_operand.vmem [shape: f32[16,1], index: 5, kind: output, shape index: {}]
  %s6 = sld [smem:[#allocation0]]
  $region53: #{tpu_custom_call.1} parent=0
    _
  %s8 = ssub.s32 1, %s6
  %s9 = scalar_select 0, %s8, %s6
  loop: start=0, step=1, limit=4
  $region2: #{tpu_custom_call.1} parent=0 // loop_pre_header
    _
  $region3: #{tpu_custom_call.1} parent=0 // loop_header
    %s11 = sphi 0, %s15
    %p12 = scmp.ge.s32.totalorder %s11, 4
    %s21 = sphi 0, %s23
    %s24 = sphi 0, %s21
    %s25 = sphi 0, %s24
    %s41 = sphi 0, %s25
    %s45 = sphi 0, %s45
    %s47 = sphi 0, %s45
    %s48 = sphi 0, %s47
    %s62 = sphi 0, %s48
    %s68 = sphi 0, %s70
    %s71 = sphi 0, %s68
    %s72 = sphi 0, %s71
    %s88 = sphi 0, %s72
    %s94 = sphi 0, %s96
    %s97 = sphi 0, %s94
    %s98 = sphi 0, %s97
    %s114 = sphi 0, %s98
    %s118 = sphi 0, %s118
    %s120 = sphi 0, %s118
    %s121 = sphi 0, %s120
    %s135 = sphi 0, %s121
    %s141 = sphi 0, %s143
    %s144 = sphi 0, %s141
    %s145 = sphi 0, %s144
    %s161 = sphi 0, %s145
  $region4: #{tpu_custom_call.1} parent=0 // loop_header_branch
    %14 = sbr.rel (%p12) target = $region8
  $region5: #{tpu_custom_call.1} parent=0 // loop_body
    %s16 = ssub.s32 %s11, 1
    %s17 = ssub.s32 %s11, 2
    %s18 = sadd.s32 %s11, 1
    %s19 = ssub.s32 %s11, %s18
    %p20 = scmp.eq.s32.totalorder %s19, 0
    %s22 = sadd.s32 %s21, 1
    %s23 = scalar_select %p20, %s21, %s22
    %p26 = pneg %p20
    %p27 = scmp.eq.s32.totalorder %s11, 1
    %p28 = por %p26, %p27
    %p29 = scmp.ne.s32.totalorder %s21, %s24
    %p30 = scmp.eq.s32.totalorder %s11, 0
    %p31 = por %p29, %p30
    %p32 = scmp.ne.s32.totalorder %s21, %s24
    %p33 = scmp.eq.s32.totalorder %s16, 1
    %p34 = por %p32, %p33
    %p35 = scmp.ne.s32.totalorder %s24, %s25
    %p36 = scmp.eq.s32.totalorder %s16, 0
    %p37 = por %p35, %p36
    %p38 = scmp.ne.s32.totalorder %s24, %s25
    %p39 = scmp.eq.s32.totalorder %s17, 1
    %p40 = por %p38, %p39
    %p42 = scmp.ne.s32.totalorder %s25, %s41
    %p43 = scmp.eq.s32.totalorder %s17, 0
    %p44 = por %p42, %p43
    %s46 = sadd.s32 %s45, 1
    %p49 = scmp.eq.s32.totalorder %s11, 1
    %p50 = scmp.ne.s32.totalorder %s45, %s47
    %p51 = scmp.eq.s32.totalorder %s11, 0
    %p52 = por %p50, %p51
    %p53 = scmp.ne.s32.totalorder %s45, %s47
    %p54 = scmp.eq.s32.totalorder %s16, 1
    %p55 = por %p53, %p54
    %p56 = scmp.ne.s32.totalorder %s47, %s48
    %p57 = scmp.eq.s32.totalorder %s16, 0
    %p58 = por %p56, %p57
    %p59 = scmp.ne.s32.totalorder %s47, %s48
    %p60 = scmp.eq.s32.totalorder %s17, 1
    %p61 = por %p59, %p60
    %p63 = scmp.ne.s32.totalorder %s48, %s62
    %p64 = scmp.eq.s32.totalorder %s17, 0
    %p65 = por %p63, %p64
    %s66 = ssub.s32 %s11, %s18
    %p67 = scmp.eq.s32.totalorder %s66, 0
    %s69 = sadd.s32 %s68, 1
    %s70 = scalar_select %p67, %s68, %s69
    %p73 = pneg %p67
    %p74 = scmp.eq.s32.totalorder %s11, 1
    %p75 = por %p73, %p74
    %p76 = scmp.ne.s32.totalorder %s68, %s71
    %p77 = scmp.eq.s32.totalorder %s11, 0
    %p78 = por %p76, %p77
    %p79 = scmp.ne.s32.totalorder %s68, %s71
    %p80 = scmp.eq.s32.totalorder %s16, 1
    %p81 = por %p79, %p80
    %p82 = scmp.ne.s32.totalorder %s71, %s72
    %p83 = scmp.eq.s32.totalorder %s16, 0
    %p84 = por %p82, %p83
    %p85 = scmp.ne.s32.totalorder %s71, %s72
    %p86 = scmp.eq.s32.totalorder %s17, 1
    %p87 = por %p85, %p86
    %p89 = scmp.ne.s32.totalorder %s72, %s88
    %p90 = scmp.eq.s32.totalorder %s17, 0
    %p91 = por %p89, %p90
    %s92 = ssub.s32 %s11, %s18
    %p93 = scmp.eq.s32.totalorder %s92, 0
    %s95 = sadd.s32 %s94, 1
    %s96 = scalar_select %p93, %s94, %s95
    %p99 = pneg %p93
    %p100 = scmp.eq.s32.totalorder %s11, 1
    %p101 = por %p99, %p100
    %p102 = scmp.ne.s32.totalorder %s94, %s97
    %p103 = scmp.eq.s32.totalorder %s11, 0
    %p104 = por %p102, %p103
    %p105 = scmp.ne.s32.totalorder %s94, %s97
    %p106 = scmp.eq.s32.totalorder %s16, 1
    %p107 = por %p105, %p106
    %p108 = scmp.ne.s32.totalorder %s97, %s98
    %p109 = scmp.eq.s32.totalorder %s16, 0
    %p110 = por %p108, %p109
    %p111 = scmp.ne.s32.totalorder %s97, %s98
    %p112 = scmp.eq.s32.totalorder %s17, 1
    %p113 = por %p111, %p112
    %p115 = scmp.ne.s32.totalorder %s98, %s114
    %p116 = scmp.eq.s32.totalorder %s17, 0
    %p117 = por %p115, %p116
    %s119 = sadd.s32 %s118, 1
    %p122 = scmp.eq.s32.totalorder %s11, 1
    %p123 = scmp.ne.s32.totalorder %s118, %s120
    %p124 = scmp.eq.s32.totalorder %s11, 0
    %p125 = por %p123, %p124
    %p126 = scmp.ne.s32.totalorder %s118, %s120
    %p127 = scmp.eq.s32.totalorder %s16, 1
    %p128 = por %p126, %p127
    %p129 = scmp.ne.s32.totalorder %s120, %s121
    %p130 = scmp.eq.s32.totalorder %s16, 0
    %p131 = por %p129, %p130
    %p132 = scmp.ne.s32.totalorder %s120, %s121
    %p133 = scmp.eq.s32.totalorder %s17, 1
    %p134 = por %p132, %p133
    %p136 = scmp.ne.s32.totalorder %s121, %s135
    %p137 = scmp.eq.s32.totalorder %s17, 0
    %p138 = por %p136, %p137
    %s139 = ssub.s32 %s11, %s18
    %p140 = scmp.eq.s32.totalorder %s139, 0
    %s142 = sadd.s32 %s141, 1
    %s143 = scalar_select %p140, %s141, %s142
    %p146 = pneg %p140
    %p147 = scmp.eq.s32.totalorder %s11, 1
    %p148 = por %p146, %p147
    %p149 = scmp.ne.s32.totalorder %s141, %s144
    %p150 = scmp.eq.s32.totalorder %s11, 0
    %p151 = por %p149, %p150
    %p152 = scmp.ne.s32.totalorder %s141, %s144
    %p153 = scmp.eq.s32.totalorder %s16, 1
    %p154 = por %p152, %p153
    %p155 = scmp.ne.s32.totalorder %s144, %s145
    %p156 = scmp.eq.s32.totalorder %s16, 0
    %p157 = por %p155, %p156
    %p158 = scmp.ne.s32.totalorder %s144, %s145
    %p159 = scmp.eq.s32.totalorder %s17, 1
    %p160 = por %p158, %p159
    %p162 = scmp.ne.s32.totalorder %s145, %s161
    %p163 = scmp.eq.s32.totalorder %s17, 0
    %p164 = por %p162, %p163
    %p165 = scmp.le.s32.totalorder 1, %s11
    %p166 = scmp.lt.s32.totalorder %s11, 3
    %p167 = pnand %p165, %p166
    %p168 = pneg %p167
    // Predicated region
    $region9: #{tpu_custom_call.1} parent=5 // pred_check
      _
    $region10: #{tpu_custom_call.1} parent=5 // pred_check_branch
      %170 = sbr.rel (%p167) target = $region12
    $region11: #{tpu_custom_call.1} parent=5 // pred_region
      %s171 = ssub.s32 %s11, 1
      // Predicated region
      $region13: #{tpu_custom_call.1} parent=11 // pred_check
        %p172 = pneg %p58
      $region14: #{tpu_custom_call.1} parent=11 // pred_check_branch
        %174 = sbr.rel (%p172) target = $region16
      $region15: #{tpu_custom_call.1} parent=11 // pred_region
        _
      $region16: #{tpu_custom_call.1} parent=11 // pred_fallthru
        _
      // Predicated region
      $region17: #{tpu_custom_call.1} parent=11 // pred_check
        %p175 = pneg %p131
      $region18: #{tpu_custom_call.1} parent=11 // pred_check_branch
        %177 = sbr.rel (%p175) target = $region20
      $region19: #{tpu_custom_call.1} parent=11 // pred_region
        _
      $region20: #{tpu_custom_call.1} parent=11 // pred_fallthru
        _
    $region12: #{tpu_custom_call.1} parent=5 // pred_fallthru
      _
    %p178 = scmp.lt.s32.totalorder %s11, 2
    // Predicated region
    $region21: #{tpu_custom_call.1} parent=5 // pred_check
      %p179 = pneg %p178
    $region22: #{tpu_custom_call.1} parent=5 // pred_check_branch
      %181 = sbr.rel (%p179) target = $region24
    $region23: #{tpu_custom_call.1} parent=5 // pred_region
      // Predicated region
      $region25: #{tpu_custom_call.1} parent=23 // pred_check
        %p182 = pneg %p31
      $region26: #{tpu_custom_call.1} parent=23 // pred_check_branch
        %184 = sbr.rel (%p182) target = $region28
      $region27: #{tpu_custom_call.1} parent=23 // pred_region
        %p185 = scmp.lt.s32.totalorder %s11, 1
        %s186 = scalar_select %p185, %s11, 1
        %s187 = smul.addr %s186, 8
        %s188 = scalar_lea.vmem %s0, %s187
      $region28: #{tpu_custom_call.1} parent=23 // pred_fallthru
        _
      // Predicated region
      $region29: #{tpu_custom_call.1} parent=23 // pred_check
        %p189 = pneg %p78
      $region30: #{tpu_custom_call.1} parent=23 // pred_check_branch
        %191 = sbr.rel (%p189) target = $region32
      $region31: #{tpu_custom_call.1} parent=23 // pred_region
        %p192 = scmp.lt.s32.totalorder %s11, 1
        %s193 = scalar_select %p192, %s11, 1
        %s194 = smul.addr %s193, 8
        %s195 = scalar_lea.vmem %s2, %s194
      $region32: #{tpu_custom_call.1} parent=23 // pred_fallthru
        _
      // Predicated region
      $region33: #{tpu_custom_call.1} parent=23 // pred_check
        %p196 = pneg %p104
      $region34: #{tpu_custom_call.1} parent=23 // pred_check_branch
        %198 = sbr.rel (%p196) target = $region36
      $region35: #{tpu_custom_call.1} parent=23 // pred_region
        %p199 = scmp.lt.s32.totalorder %s11, 1
        %s200 = scalar_select %p199, %s11, 1
        %s201 = smul.addr %s200, 8
        %s202 = scalar_lea.vmem %s3, %s201
      $region36: #{tpu_custom_call.1} parent=23 // pred_fallthru
        _
    $region24: #{tpu_custom_call.1} parent=5 // pred_fallthru
      _
    %p203 = scmp.le.s32.totalorder 1, %s11
    %p204 = scmp.lt.s32.totalorder %s11, 3
    %p205 = pnand %p203, %p204
    %p206 = pneg %p205
    // Predicated region
    $region37: #{tpu_custom_call.1} parent=5 // pred_check
      _
    $region38: #{tpu_custom_call.1} parent=5 // pred_check_branch
      %208 = sbr.rel (%p205) target = $region40
    $region39: #{tpu_custom_call.1} parent=5 // pred_region
      %s209 = ssub.s32 %s11, 1
      %p210 = scmp.lt.s32.totalorder %s16, 1
      %s211 = scalar_select %p210, %s16, 1
      %s212 = smul.addr %s211, 8
      %s213 = scalar_lea.vmem %s0, %s212
      %p214 = pneg %p37
      %p215 = pneg %p34
      %p216 = pneg %p58
      %p217 = pneg %p55
      %p218 = scmp.lt.s32.totalorder %s16, 1
      %s219 = scalar_select %p218, %s16, 1
      %s220 = smul.addr %s219, 8
      %s221 = scalar_lea.vmem %s2, %s220
      %p222 = pneg %p84
      %p223 = pneg %p81
      %p224 = scmp.lt.s32.totalorder %s16, 1
      %s225 = scalar_select %p224, %s16, 1
      %s226 = smul.addr %s225, 8
      %s227 = scalar_lea.vmem %s3, %s226
      %p228 = pneg %p110
      %p229 = pneg %p107
      %p230 = pneg %p131
      %p231 = pneg %p128
      %p232 = pneg %p157
      %p233 = pneg %p154
      %p234 = scmp.lt.s32.totalorder %s16, 1
      %s235 = scalar_select %p234, %s16, 1
      %s236 = smul.addr %s235, 8
      %s237 = scalar_lea.vmem %s5, %s236
      %p238 = scmp.lt.s32.totalorder %s16, 1
      %s239 = scalar_select %p238, %s16, 1
      %s240 = smul.addr %s239, 8
      %s241 = scalar_lea.vmem %s0, %s240
      %p242 = scmp.lt.s32.totalorder %s16, 1
      %s243 = scalar_select %p242, %s16, 1
      %s244 = smul.addr %s243, 8
      %s245 = scalar_lea.vmem %s2, %s244
      %p246 = scmp.lt.s32.totalorder %s16, 1
      %s247 = scalar_select %p246, %s16, 1
      %s248 = smul.addr %s247, 8
      %s249 = scalar_lea.vmem %s3, %s248
      %p250 = scmp.lt.s32.totalorder %s16, 1
      %s251 = scalar_select %p250, %s16, 1
      %s252 = smul.addr %s251, 8
      %s253 = scalar_lea.vmem %s5, %s252
      %v254 = vld [vmem:[%s249] sm:$0xff]
      %v255 = vld [vmem:[%s4] sm:$0xff]
      %v256 = vld [vmem:[%s4 + $0x8] sm:$0xff]
      %v257 = vld [vmem:[%s4 + $0x10] sm:$0xff]
      %v258 = vld [vmem:[%s4 + $0x18] sm:$0xff]
      %vm259 = vcmask 261120
      %v261 = vsel %vm259, %v254, 0
      %263 = vmatprep.subr.mxu0 0.0
      %264 = vmatpush1.msra.mxu0 %v255
      %265 = vmatprep.subr.mxu0 0.0
      %266 = vmatpush1.msra.mxu0 %v256
      %267 = vmatprep.subr.mxu0 0.0
      %268 = vmatpush1.msra.mxu0 %v257
      %269 = vmatprep.subr.mxu0 0.0
      %270 = vmatpush1.msra.mxu0 %v258
      %271 = vmatprep.subr.mxu0 0.0
      %272 = vmatpush1.msra.mxu0 0.0
      %273 = vmatprep.subr.mxu0 0.0
      %274 = vmatpush1.msra.mxu0 0.0
      %275 = vmatprep.subr.mxu0 0.0
      %276 = vmatpush1.msra.mxu0 0.0
      %277 = vmatprep.subr.mxu0 0.0
      %278 = vmatpush1.msra.mxu0 0.0
      %279 = vmatprep.subr.mxu0 0.0
      %280 = vmatpush1.msra.mxu0 0.0
      %281 = vmatprep.subr.mxu0 0.0
      %282 = vmatpush1.msra.mxu0 0.0
      %283 = vmatprep.subr.mxu0 0.0
      %284 = vmatpush1.msra.mxu0 0.0
      %285 = vmatprep.subr.mxu0 0.0
      %286 = vmatpush1.msra.mxu0 0.0
      %287 = vmatprep.subr.mxu0 0.0
      %288 = vmatpush1.msra.mxu0 0.0
      %289 = vmatprep.subr.mxu0 0.0
      %290 = vmatpush1.msra.mxu0 0.0
      %291 = vmatprep.subr.mxu0 0.0
      %292 = vmatpush1.msra.mxu0 0.0
      %293 = vmatprep.subr.mxu0 0.0
      %294 = vmatpush1.msra.mxu0 0.0
      %295 = vmatprep.subr.mxu0 0.0
      %296 = vmatpush1.msra.mxu0 0.0
      %297 = vmatprep.subr.mxu0 0.0
      %298 = vmatpush1.msra.mxu0 0.0
      %299 = vmatprep.subr.mxu0 0.0
      %300 = vmatpush1.msra.mxu0 0.0
      %301 = vmatprep.subr.mxu0 0.0
      %302 = vmatpush1.msra.mxu0 0.0
      %303 = vmatprep.subr.mxu0 0.0
      %304 = vmatpush1.msra.mxu0 0.0
      %305 = vmatprep.subr.mxu0 0.0
      %306 = vmatpush1.msra.mxu0 0.0
      %307 = vmatprep.subr.mxu0 0.0
      %308 = vmatpush1.msra.mxu0 0.0
      %309 = vmatprep.subr.mxu0 0.0
      %310 = vmatpush1.msra.mxu0 0.0
      %311 = vmatprep.subr.mxu0 0.0
      %312 = vmatpush1.msra.mxu0 0.0
      %313 = vmatprep.subr.mxu0 0.0
      %314 = vmatpush1.msra.mxu0 0.0
      %315 = vmatprep.subr.mxu0 0.0
      %316 = vmatpush1.msra.mxu0 0.0
      %317 = vmatprep.subr.mxu0 0.0
      %318 = vmatpush1.msra.mxu0 0.0
      %319 = vmatprep.subr.mxu0 0.0
      %320 = vmatpush1.msra.mxu0 0.0
      %321 = vmatprep.subr.mxu0 0.0
      %322 = vmatpush1.msra.mxu0 0.0
      %323 = vmatprep.subr.mxu0 0.0
      %324 = vmatpush1.msra.mxu0 0.0
      %325 = vmatprep.subr.mxu0 0.0
      %326 = vmatpush1.msra.mxu0 0.0
      %327 = vmatprep.mubr.f32.mxu0 0.0
      %328 = vmatmul.mubr.f32.gmra.mrb[0].mxu0 %v261
      %v329 = vpop.f32.mrb[0].mxu0
      %v330 = vadd.f32 0.0, %v329
      %v331 = vpop.f32.mrb[0].mxu0
      %332 = vdwg.mxu0
      %s333 = smul.u32 %s16, 8
      %v334 = vlaneseq
      %v335 = vshrl.u32 %v334, 7
      %v336 = vstv %s333
      %v337 = vadd.s32 %v336, %v335
      %v338 = vlaneseq
      %v339 = vand.u32 %v338, 127
      %vm340 = vcmp.ne.s32.totalorder %v337, %v339
      %vm341 = vcmask 130048
      %v342 = vsel %vm341, %v330, -inf
      %343 = vmax.xlane.f32.xlu0 %v342
      %v344 = vpop.xlane.xlu0 %343
      %v345 = vsub.f32 %v330, %v344
      %v346 = vmul.f32 %v345, 1.442695
      %v347 = vpow.pop %v346
      %v348 = vsel %vm340, %v347, 0.0
      %v349 = vsel %vm341, %v348, 0.0
      %350 = vadd.xlane.f32.xlu0 %v349
      %v351 = vpop.xlane.xlu0 %350
      %v352 = vlog2.pop %v351
      %v353 = vmul.f32 %v352, 0.6931472
      %v354 = vadd.f32 %v344, %v353
      %v355 = vld [vmem:[%s241] sm:$0xff]
      %v356 = vld [vmem:[%s1] sm:$0x1]
      %357 = vset.pattern.permute.xlu0 0
      %358 = vperm.xlu0 %357, %v355
      %v359 = vpop.permute.xlu0 %358
      %v360 = vlaneseq
      %v361 = vshrl.u32 %v360, 7
      %v362 = vsub.s32 0, %v361
      %v363 = vrot.slane %v356, %v362
      %vm364 = vcmp.eq.s32.totalorder %v359, %v363
      %vm365 = vmand %vm364, %vm340
      %v366 = vsel %vm365, %v330, 0.0
      %v367 = vsel %vm341, %v366, 0.0
      %368 = vadd.xlane.f32.xlu0 %v367
      %v369 = vpop.xlane.xlu0 %368
      %v370 = vld [vmem:[%s245] sm:$0xff]
      %v371 = vmul.f32 %v370, %v354
      %v372 = vsub.f32 %v369, %v371
      %v373 = vmul.f32 %v372, -1.0
      %v374 = vrcp.pop %v370
      %v375 = vmul.f32 %v373, %v374
      %vm376 = vcmask 7168
      %377 = vst.msk [vmem:[%s253] sm:$0xff] %vm376, %v375
      %p378 = scmp.lt.s32.totalorder %s16, 1
      %s379 = scalar_select %p378, %s16, 1
      %s380 = smul.addr %s379, 8
      %s381 = scalar_lea.vmem %s5, %s380
      // Predicated region
      $region41: #{tpu_custom_call.1} parent=39 // pred_check
        %p382 = pneg %p154
      $region42: #{tpu_custom_call.1} parent=39 // pred_check_branch
        %384 = sbr.rel (%p382) target = $region44
      $region43: #{tpu_custom_call.1} parent=39 // pred_region
        _
      $region44: #{tpu_custom_call.1} parent=39 // pred_fallthru
        _
    $region40: #{tpu_custom_call.1} parent=5 // pred_fallthru
      _
    %p385 = scmp.le.s32.totalorder 2, %s11
    // Predicated region
    $region45: #{tpu_custom_call.1} parent=5 // pred_check
      %p386 = pneg %p385
    $region46: #{tpu_custom_call.1} parent=5 // pred_check_branch
      %388 = sbr.rel (%p386) target = $region48
    $region47: #{tpu_custom_call.1} parent=5 // pred_region
      %s389 = ssub.s32 %s11, 2
      // Predicated region
      $region49: #{tpu_custom_call.1} parent=47 // pred_check
        %p390 = pneg %p160
      $region50: #{tpu_custom_call.1} parent=47 // pred_check_branch
        %392 = sbr.rel (%p390) target = $region52
      $region51: #{tpu_custom_call.1} parent=47 // pred_region
        %p393 = scmp.lt.s32.totalorder %s17, 1
        %s394 = scalar_select %p393, %s17, 1
        %s395 = smul.addr %s394, 8
        %s396 = scalar_lea.vmem %s5, %s395
      $region52: #{tpu_custom_call.1} parent=47 // pred_fallthru
        _
    $region48: #{tpu_custom_call.1} parent=5 // pred_fallthru
      _
  $region6: #{tpu_custom_call.1} parent=0 // loop_footer
    %s15 = sadd.s32 1, %s11
  $region7: #{tpu_custom_call.1} parent=0 // loop_footer_branch
    %10 = sbr.rel target = $region3
  $region8: #{tpu_custom_call.1} parent=0 // loop_exit
    _

</llo_original>
